<compile_context>
chip_gen: v7x
topology: tpu7x:2x2x1
jax: 0.10.0
libtpu: 0.0.40
codegen_flags: <defaults>
</compile_context>

<pallas_src>
import functools

import jax
import jax.numpy as jnp
from jax.experimental import pallas as pl
from jax.experimental.pallas import tpu as pltpu

_LANES = 128
_VEC_ROWS = 16  # 10 used rows (b1,g1,be1,b2,g2,be2,b3,g3,be3,b4), padded to 16


def _round_up(n, m):
    return ((n + m - 1) // m) * m


def _cdiv(a, b):
    return (a + b - 1) // b


def _mxu(h, w_ref):
    # bf16 operands -> f32 accumulation on the MXU (no-op cast if already bf16).
    return jnp.dot(h.astype(jnp.bfloat16), w_ref[...],
                   preferred_element_type=jnp.float32)


def _layernorm_mxu(h, mean_mat, g, b, eps=1e-5):
    """LayerNorm with both row reductions done on the MXU.

    `mean_mat` is the constant ones(d, d)/d matrix, so one f32 dot both
    reduces across the lane axis and re-broadcasts the result -> zero XLU
    work.  Two-pass (centered) variance avoids mean(h^2)-mu^2 cancellation.
    Elementwise math stays f32 on the VPU; rsqrt runs on the EUP.
    """
    mu = jnp.dot(h, mean_mat, preferred_element_type=jnp.float32)
    hc = h - mu
    var = jnp.dot(hc * hc, mean_mat, preferred_element_type=jnp.float32)
    return hc * jax.lax.rsqrt(var + eps) * g + b


def dqn_kernel(x_ref, w1_ref, w2_ref, w3_ref, w4_ref, vec_ref, o_ref):
    d1 = w1_ref.shape[1]   # hidden * 2
    d2 = w3_ref.shape[1]   # hidden
    vecs = vec_ref[...]    # (16, 128) f32: b1,g1,be1,b2,g2,be2,b3,g3,be3,b4(pad)

    # Constant reduce-and-broadcast matrices (hoisted; splat constants only).
    mean1 = jnp.full((d1, d1), 1.0 / d1, dtype=jnp.float32)
    mean2 = jnp.full((d2, d2), 1.0 / d2, dtype=jnp.float32)

    # fc1 -> ln1 -> relu   (Dropout = identity at inference)
    h = _mxu(x_ref[...], w1_ref) + vecs[0:1, :d1]
    h = jnp.maximum(_layernorm_mxu(h, mean1, vecs[1:2, :d1], vecs[2:3, :d1]), 0.0)
    # TODO(synk): training-mode Dropout(0.2) would need pltpu.prng_seed /
    # prng_random_bits + mask; identity here matches model.eval() semantics.

    # fc2 -> ln2 -> relu
    h = _mxu(h, w2_ref) + vecs[3:4, :d1]
    h = jnp.maximum(_layernorm_mxu(h, mean1, vecs[4:5, :d1], vecs[5:6, :d1]), 0.0)

    # fc3 -> ln3 -> relu
    h = _mxu(h, w3_ref) + vecs[6:7, :d2]
    h = jnp.maximum(_layernorm_mxu(h, mean2, vecs[7:8, :d2], vecs[8:9, :d2]), 0.0)

    # fc4: output lanes zero-padded to 128 -> unmasked, lane-dense bf16 store.
    o_ref[...] = (_mxu(h, w4_ref) + vecs[9:10, :]).astype(o_ref.dtype)


@functools.partial(jax.jit, static_argnames=("out_size", "tb"))
def dqn_forward(x, params, out_size, tb=None):
    w1, w2, w3, w4p, vecs = params
    B, F = x.shape
    out_pad = w4p.shape[1]
    d1, d2 = w1.shape[1], w3.shape[1]

    # Batch tile: >= 2 grid steps for B > 16 so ("parallel",) feeds both v7x
    # TensorCores; cap at 256 to keep live ranges off the spill path.
    if tb is None:
        if B <= 16:
            tb = B                                   # single full-dim block
        else:
            tb = min(256, _round_up(_cdiv(B, 2), 16))
    n_blocks = _cdiv(B, tb)
    b_pad = n_blocks * tb

    # Stream activations as bf16 (they are cast at the MXU anyway).
    x = x.astype(jnp.bfloat16)
    if b_pad != B:
        # Only for batch sizes that don't tile exactly; multiple-of-32
        # batches (and B <= 16) take the no-copy path.
        x = jnp.pad(x, ((0, b_pad - B), (0, 0)))

    const = lambda i: (0, 0)  # weights resident in VMEM across the whole grid

    mm_flops = 2 * b_pad * (F * d1 + d1 * d1 + d1 * d2 + d2 * out_pad)
    ln_flops = 4 * b_pad * (d1 * d1 + d1 * d1 + d2 * d2)   # mu + var dots
    bytes_accessed = (x.size * x.dtype.itemsize
                      + sum(a.size * a.dtype.itemsize
                            for a in (w1, w2, w3, w4p, vecs))
                      + b_pad * out_pad * 2)               # bf16 writeback

    out = pl.pallas_call(
        dqn_kernel,
        out_shape=jax.ShapeDtypeStruct((b_pad, out_pad), jnp.bfloat16),
        grid=(n_blocks,),
        in_specs=[
            pl.BlockSpec((tb, F), lambda i: (i, 0)),   # activation stream
            pl.BlockSpec(w1.shape, const),
            pl.BlockSpec(w2.shape, const),
            pl.BlockSpec(w3.shape, const),
            pl.BlockSpec(w4p.shape, const),
            pl.BlockSpec(vecs.shape, const),
        ],
        out_specs=pl.BlockSpec((tb, out_pad), lambda i: (i, 0)),
        compiler_params=pltpu.CompilerParams(
            dimension_semantics=("parallel",),        # megacore on v7x
            vmem_limit_bytes=32 * 1024 * 1024),
        cost_estimate=pl.CostEstimate(
            flops=mm_flops + ln_flops,
            transcendentals=b_pad * (2 * d1 + d2),
            bytes_accessed=bytes_accessed),
    )(x, w1, w2, w3, w4p, vecs)
    return out[:B, :out_size]


def init_raw_params(key, input_size, hidden_size, output_size):
    """PyTorch-style init; weights stored as [in, out] (transpose of nn.Linear)."""
    h2 = hidden_size * 2
    dims = [(input_size, h2), (h2, h2), (h2, hidden_size),
            (hidden_size, output_size)]
    params = []
    for i, (fan_in, fan_out) in enumerate(dims):
        key, kw, kb = jax.random.split(key, 3)
        bound = 1.0 / jnp.sqrt(fan_in)
        w = jax.random.uniform(kw, (fan_in, fan_out), jnp.float32, -bound, bound)
        b = jax.random.uniform(kb, (fan_out,), jnp.float32, -bound, bound)
        params.extend([w, b])
        if i < 3:  # LayerNorm gamma/beta for layers 1-3
            params.extend([jnp.ones((fan_out,), jnp.float32),
                           jnp.zeros((fan_out,), jnp.float32)])
    # order: w1,b1,g1,be1, w2,b2,g2,be2, w3,b3,g3,be3, w4,b4
    return tuple(params)


def pack_params(raw):
    """Pack raw f32 params into kernel params: bf16 weights + one f32 vector slab."""
    (w1, b1, g1, be1, w2, b2, g2, be2, w3, b3, g3, be3, w4, b4) = raw
    out = w4.shape[1]
    out_pad = _round_up(max(out, _LANES), _LANES)
    w4p = jnp.zeros((w4.shape[0], out_pad), jnp.float32).at[:, :out].set(w4)

    def row(v):
        return jnp.zeros((_LANES,), jnp.float32).at[:v.shape[0]].set(v)

    rows = [row(b1), row(g1), row(be1),
            row(b2), row(g2), row(be2),
            row(b3), row(g3), row(be3),
            jnp.zeros((_LANES,), jnp.float32).at[:out].set(b4)]
    rows += [jnp.zeros((_LANES,), jnp.float32)] * (_VEC_ROWS - len(rows))
    vecs = jnp.stack(rows)  # (16, 128) f32

    return (w1.astype(jnp.bfloat16), w2.astype(jnp.bfloat16),
            w3.astype(jnp.bfloat16), w4p.astype(jnp.bfloat16), vecs)


def dqn_reference(x, raw, mxu_dtype=jnp.float32):
    (w1, b1, g1, be1, w2, b2, g2, be2, w3, b3, g3, be3, w4, b4) = raw

    def mm(h, w):
        return jnp.dot(h.astype(mxu_dtype), w.astype(mxu_dtype),
                       preferred_element_type=jnp.float32)

    def ln(h, g, b):
        mu = jnp.mean(h, -1, keepdims=True)
        var = jnp.mean((h - mu) ** 2, -1, keepdims=True)
        return (h - mu) * jax.lax.rsqrt(var + 1e-5) * g + b

    h = jax.nn.relu(ln(mm(x, w1) + b1, g1, be1))
    h = jax.nn.relu(ln(mm(h, w2) + b2, g2, be2))
    h = jax.nn.relu(ln(mm(h, w3) + b3, g3, be3))
    return mm(h, w4) + b4


if __name__ == "__main__":
    B, input_size, hidden_size, output_size = 8, 16, 32, 4
    key = jax.random.PRNGKey(0)
    key, kx = jax.random.split(key)
    x = jax.random.normal(kx, (B, input_size), jnp.float32)

    raw = init_raw_params(key, input_size, hidden_size, output_size)
    params = pack_params(raw)

    out = dqn_forward(x, params, output_size)
    jax.block_until_ready(out)
    assert out.shape == (B, output_size)

    # Kernel output is bf16 (halves writeback); compare in f32.  Tolerances
    # bound bf16-at-MXU + bf16-output drift vs. the f32 PyTorch-equivalent.
    out_f32 = out.astype(jnp.float32)
    ref_bf16 = dqn_reference(x, raw, mxu_dtype=jnp.bfloat16)
    ref_f32 = dqn_reference(x, raw, mxu_dtype=jnp.float32)
    assert jnp.allclose(out_f32, ref_bf16, atol=2e-2, rtol=2e-2)
    assert jnp.allclose(out_f32, ref_f32, atol=5e-2, rtol=5e-2)
    print("KERNEL_OK")
</pallas_src>

<mosaic_0001>
module attributes {stable_mosaic.version = 11 : i64} {
  func.func @dqn_kernel(%arg0: i32, %arg1: memref<8x16xbf16, #tpu.memory_space<vmem>>, %arg2: memref<16x64xbf16, #tpu.memory_space<vmem>>, %arg3: memref<64x64xbf16, #tpu.memory_space<vmem>>, %arg4: memref<64x32xbf16, #tpu.memory_space<vmem>>, %arg5: memref<32x128xbf16, #tpu.memory_space<vmem>>, %arg6: memref<16x128xf32, #tpu.memory_space<vmem>>, %arg7: memref<8x128xbf16, #tpu.memory_space<vmem>>) attributes {dimension_semantics = [#tpu.dimension_semantics<parallel>], iteration_bounds = array<i64: 1>, scalar_prefetch = 0 : i64, scratch_operands = 0 : i64, tpu.core_type = #tpu.core_type<tc>, window_params = [{transform_indices = @transform_0, window_bounds = array<i64: 8, 16>}, {pipeline_mode = #tpu.pipeline_mode<synchronous>, transform_indices = @transform_1, window_bounds = array<i64: 16, 64>}, {pipeline_mode = #tpu.pipeline_mode<synchronous>, transform_indices = @transform_2, window_bounds = array<i64: 64, 64>}, {pipeline_mode = #tpu.pipeline_mode<synchronous>, transform_indices = @transform_3, window_bounds = array<i64: 64, 32>}, {pipeline_mode = #tpu.pipeline_mode<synchronous>, transform_indices = @transform_4, window_bounds = array<i64: 32, 128>}, {pipeline_mode = #tpu.pipeline_mode<synchronous>, transform_indices = @transform_5, window_bounds = array<i64: 16, 128>}, {transform_indices = @transform_6, window_bounds = array<i64: 8, 128>}]} {
    %c0 = arith.constant 0 : index
    %c0_0 = arith.constant 0 : index
    %0 = vector.load %arg6[%c0, %c0_0] : memref<16x128xf32, #tpu.memory_space<vmem>>, vector<16x128xf32>
    %cst = arith.constant 1.562500e-02 : f32
    %1 = vector.broadcast %cst : f32 to vector<64x64xf32>
    %cst_1 = arith.constant 3.125000e-02 : f32
    %2 = vector.broadcast %cst_1 : f32 to vector<32x32xf32>
    %c0_2 = arith.constant 0 : index
    %c0_3 = arith.constant 0 : index
    %3 = vector.load %arg1[%c0_2, %c0_3] : memref<8x16xbf16, #tpu.memory_space<vmem>>, vector<8x16xbf16>
    %c0_4 = arith.constant 0 : index
    %c0_5 = arith.constant 0 : index
    %4 = vector.load %arg2[%c0_4, %c0_5] : memref<16x64xbf16, #tpu.memory_space<vmem>>, vector<16x64xbf16>
    %cst_6 = arith.constant dense<0.000000e+00> : vector<8x64xf32>
    %5 = tpu.matmul %3, %4, %cst_6 {dimension_numbers = #tpu.dot_dimension_numbers<[1], [0], [0], [1], [0, 0, 1, 1], [], []>} : vector<8x16xbf16>, vector<16x64xbf16>, vector<8x64xf32> -> vector<8x64xf32>
    %6 = vector.extract_strided_slice %0 {offsets = [0, 0], sizes = [1, 64], strides = [1, 1]} : vector<16x128xf32> to vector<1x64xf32>
    %7 = vector.broadcast %6 : vector<1x64xf32> to vector<8x64xf32>
    %8 = arith.addf %5, %7 : vector<8x64xf32>
    %9 = vector.extract_strided_slice %0 {offsets = [1, 0], sizes = [1, 64], strides = [1, 1]} : vector<16x128xf32> to vector<1x64xf32>
    %10 = vector.extract_strided_slice %0 {offsets = [2, 0], sizes = [1, 64], strides = [1, 1]} : vector<16x128xf32> to vector<1x64xf32>
    %cst_7 = arith.constant dense<0.000000e+00> : vector<8x64xf32>
    %11 = tpu.matmul %8, %1, %cst_7 {dimension_numbers = #tpu.dot_dimension_numbers<[1], [0], [0], [1], [0, 0, 1, 1], [], []>} : vector<8x64xf32>, vector<64x64xf32>, vector<8x64xf32> -> vector<8x64xf32>
    %12 = arith.subf %8, %11 : vector<8x64xf32>
    %13 = arith.mulf %12, %12 : vector<8x64xf32>
    %cst_8 = arith.constant dense<0.000000e+00> : vector<8x64xf32>
    %14 = tpu.matmul %13, %1, %cst_8 {dimension_numbers = #tpu.dot_dimension_numbers<[1], [0], [0], [1], [0, 0, 1, 1], [], []>} : vector<8x64xf32>, vector<64x64xf32>, vector<8x64xf32> -> vector<8x64xf32>
    %cst_9 = arith.constant 9.99999974E-6 : f32
    %15 = vector.broadcast %cst_9 : f32 to vector<8x64xf32>
    %16 = arith.addf %14, %15 : vector<8x64xf32>
    %17 = math.rsqrt %16 : vector<8x64xf32>
    %18 = arith.mulf %12, %17 : vector<8x64xf32>
    %19 = vector.broadcast %9 : vector<1x64xf32> to vector<8x64xf32>
    %20 = arith.mulf %18, %19 : vector<8x64xf32>
    %21 = vector.broadcast %10 : vector<1x64xf32> to vector<8x64xf32>
    %22 = arith.addf %20, %21 : vector<8x64xf32>
    %cst_10 = arith.constant 0.000000e+00 : f32
    %23 = vector.broadcast %cst_10 : f32 to vector<8x64xf32>
    %24 = arith.maximumf %22, %23 : vector<8x64xf32>
    %25 = arith.truncf %24 : vector<8x64xf32> to vector<8x64xbf16>
    %c0_11 = arith.constant 0 : index
    %c0_12 = arith.constant 0 : index
    %26 = vector.load %arg3[%c0_11, %c0_12] : memref<64x64xbf16, #tpu.memory_space<vmem>>, vector<64x64xbf16>
    %cst_13 = arith.constant dense<0.000000e+00> : vector<8x64xf32>
    %27 = tpu.matmul %25, %26, %cst_13 {dimension_numbers = #tpu.dot_dimension_numbers<[1], [0], [0], [1], [0, 0, 1, 1], [], []>} : vector<8x64xbf16>, vector<64x64xbf16>, vector<8x64xf32> -> vector<8x64xf32>
    %28 = vector.extract_strided_slice %0 {offsets = [3, 0], sizes = [1, 64], strides = [1, 1]} : vector<16x128xf32> to vector<1x64xf32>
    %29 = vector.broadcast %28 : vector<1x64xf32> to vector<8x64xf32>
    %30 = arith.addf %27, %29 : vector<8x64xf32>
    %31 = vector.extract_strided_slice %0 {offsets = [4, 0], sizes = [1, 64], strides = [1, 1]} : vector<16x128xf32> to vector<1x64xf32>
    %32 = vector.extract_strided_slice %0 {offsets = [5, 0], sizes = [1, 64], strides = [1, 1]} : vector<16x128xf32> to vector<1x64xf32>
    %cst_14 = arith.constant dense<0.000000e+00> : vector<8x64xf32>
    %33 = tpu.matmul %30, %1, %cst_14 {dimension_numbers = #tpu.dot_dimension_numbers<[1], [0], [0], [1], [0, 0, 1, 1], [], []>} : vector<8x64xf32>, vector<64x64xf32>, vector<8x64xf32> -> vector<8x64xf32>
    %34 = arith.subf %30, %33 : vector<8x64xf32>
    %35 = arith.mulf %34, %34 : vector<8x64xf32>
    %cst_15 = arith.constant dense<0.000000e+00> : vector<8x64xf32>
    %36 = tpu.matmul %35, %1, %cst_15 {dimension_numbers = #tpu.dot_dimension_numbers<[1], [0], [0], [1], [0, 0, 1, 1], [], []>} : vector<8x64xf32>, vector<64x64xf32>, vector<8x64xf32> -> vector<8x64xf32>
    %cst_16 = arith.constant 9.99999974E-6 : f32
    %37 = vector.broadcast %cst_16 : f32 to vector<8x64xf32>
    %38 = arith.addf %36, %37 : vector<8x64xf32>
    %39 = math.rsqrt %38 : vector<8x64xf32>
    %40 = arith.mulf %34, %39 : vector<8x64xf32>
    %41 = vector.broadcast %31 : vector<1x64xf32> to vector<8x64xf32>
    %42 = arith.mulf %40, %41 : vector<8x64xf32>
    %43 = vector.broadcast %32 : vector<1x64xf32> to vector<8x64xf32>
    %44 = arith.addf %42, %43 : vector<8x64xf32>
    %cst_17 = arith.constant 0.000000e+00 : f32
    %45 = vector.broadcast %cst_17 : f32 to vector<8x64xf32>
    %46 = arith.maximumf %44, %45 : vector<8x64xf32>
    %47 = arith.truncf %46 : vector<8x64xf32> to vector<8x64xbf16>
    %c0_18 = arith.constant 0 : index
    %c0_19 = arith.constant 0 : index
    %48 = vector.load %arg4[%c0_18, %c0_19] : memref<64x32xbf16, #tpu.memory_space<vmem>>, vector<64x32xbf16>
    %cst_20 = arith.constant dense<0.000000e+00> : vector<8x32xf32>
    %49 = tpu.matmul %47, %48, %cst_20 {dimension_numbers = #tpu.dot_dimension_numbers<[1], [0], [0], [1], [0, 0, 1, 1], [], []>} : vector<8x64xbf16>, vector<64x32xbf16>, vector<8x32xf32> -> vector<8x32xf32>
    %50 = vector.extract_strided_slice %0 {offsets = [6, 0], sizes = [1, 32], strides = [1, 1]} : vector<16x128xf32> to vector<1x32xf32>
    %51 = vector.broadcast %50 : vector<1x32xf32> to vector<8x32xf32>
    %52 = arith.addf %49, %51 : vector<8x32xf32>
    %53 = vector.extract_strided_slice %0 {offsets = [7, 0], sizes = [1, 32], strides = [1, 1]} : vector<16x128xf32> to vector<1x32xf32>
    %54 = vector.extract_strided_slice %0 {offsets = [8, 0], sizes = [1, 32], strides = [1, 1]} : vector<16x128xf32> to vector<1x32xf32>
    %cst_21 = arith.constant dense<0.000000e+00> : vector<8x32xf32>
    %55 = tpu.matmul %52, %2, %cst_21 {dimension_numbers = #tpu.dot_dimension_numbers<[1], [0], [0], [1], [0, 0, 1, 1], [], []>} : vector<8x32xf32>, vector<32x32xf32>, vector<8x32xf32> -> vector<8x32xf32>
    %56 = arith.subf %52, %55 : vector<8x32xf32>
    %57 = arith.mulf %56, %56 : vector<8x32xf32>
    %cst_22 = arith.constant dense<0.000000e+00> : vector<8x32xf32>
    %58 = tpu.matmul %57, %2, %cst_22 {dimension_numbers = #tpu.dot_dimension_numbers<[1], [0], [0], [1], [0, 0, 1, 1], [], []>} : vector<8x32xf32>, vector<32x32xf32>, vector<8x32xf32> -> vector<8x32xf32>
    %cst_23 = arith.constant 9.99999974E-6 : f32
    %59 = vector.broadcast %cst_23 : f32 to vector<8x32xf32>
    %60 = arith.addf %58, %59 : vector<8x32xf32>
    %61 = math.rsqrt %60 : vector<8x32xf32>
    %62 = arith.mulf %56, %61 : vector<8x32xf32>
    %63 = vector.broadcast %53 : vector<1x32xf32> to vector<8x32xf32>
    %64 = arith.mulf %62, %63 : vector<8x32xf32>
    %65 = vector.broadcast %54 : vector<1x32xf32> to vector<8x32xf32>
    %66 = arith.addf %64, %65 : vector<8x32xf32>
    %cst_24 = arith.constant 0.000000e+00 : f32
    %67 = vector.broadcast %cst_24 : f32 to vector<8x32xf32>
    %68 = arith.maximumf %66, %67 : vector<8x32xf32>
    %69 = arith.truncf %68 : vector<8x32xf32> to vector<8x32xbf16>
    %c0_25 = arith.constant 0 : index
    %c0_26 = arith.constant 0 : index
    %70 = vector.load %arg5[%c0_25, %c0_26] : memref<32x128xbf16, #tpu.memory_space<vmem>>, vector<32x128xbf16>
    %cst_27 = arith.constant dense<0.000000e+00> : vector<8x128xf32>
    %71 = tpu.matmul %69, %70, %cst_27 {dimension_numbers = #tpu.dot_dimension_numbers<[1], [0], [0], [1], [0, 0, 1, 1], [], []>} : vector<8x32xbf16>, vector<32x128xbf16>, vector<8x128xf32> -> vector<8x128xf32>
    %72 = vector.extract_strided_slice %0 {offsets = [9, 0], sizes = [1, 128], strides = [1, 1]} : vector<16x128xf32> to vector<1x128xf32>
    %73 = vector.broadcast %72 : vector<1x128xf32> to vector<8x128xf32>
    %74 = arith.addf %71, %73 : vector<8x128xf32>
    %75 = arith.truncf %74 : vector<8x128xf32> to vector<8x128xbf16>
    %c0_28 = arith.constant 0 : index
    %c0_29 = arith.constant 0 : index
    %76 = vector.load %arg7[%c0_28, %c0_29] : memref<8x128xbf16, #tpu.memory_space<vmem>>, vector<8x128xbf16>
    tpu.vector_store %arg7[%c0_28, %c0_29], %75 {strides = array<i32>} : memref<8x128xbf16, #tpu.memory_space<vmem>>, vector<8x128xbf16>,
    return
  }
  func.func @transform_0(%arg0: i32) -> (i32, i32) {
    %c0_i32 = arith.constant 0 : i32
    %c0_i32_0 = arith.constant 0 : i32
    return %arg0, %c0_i32 : i32, i32
  }
  func.func @transform_1(%arg0: i32) -> (i32, i32) {
    %c0_i32 = arith.constant 0 : i32
    %c0_i32_0 = arith.constant 0 : i32
    %c0_i32_1 = arith.constant 0 : i32
    return %c0_i32, %c0_i32_0 : i32, i32
  }
  func.func @transform_2(%arg0: i32) -> (i32, i32) {
    %c0_i32 = arith.constant 0 : i32
    %c0_i32_0 = arith.constant 0 : i32
    %c0_i32_1 = arith.constant 0 : i32
    return %c0_i32, %c0_i32_0 : i32, i32
  }
  func.func @transform_3(%arg0: i32) -> (i32, i32) {
    %c0_i32 = arith.constant 0 : i32
    %c0_i32_0 = arith.constant 0 : i32
    %c0_i32_1 = arith.constant 0 : i32
    return %c0_i32, %c0_i32_0 : i32, i32
  }
  func.func @transform_4(%arg0: i32) -> (i32, i32) {
    %c0_i32 = arith.constant 0 : i32
    %c0_i32_0 = arith.constant 0 : i32
    %c0_i32_1 = arith.constant 0 : i32
    return %c0_i32, %c0_i32_0 : i32, i32
  }
  func.func @transform_5(%arg0: i32) -> (i32, i32) {
    %c0_i32 = arith.constant 0 : i32
    %c0_i32_0 = arith.constant 0 : i32
    %c0_i32_1 = arith.constant 0 : i32
    return %c0_i32, %c0_i32_0 : i32, i32
  }
  func.func @transform_6(%arg0: i32) -> (i32, i32) {
    %c0_i32 = arith.constant 0 : i32
    %c0_i32_0 = arith.constant 0 : i32
    return %arg0, %c0_i32 : i32, i32
  }
}

</mosaic_0001>

<llo_original>
// kernel: dqn_forward.1
$region0: #{dqn_forward.1}
  #allocation0 [shape = 'u32[]', space=smem, size = 0x4, offset = 0x4, fixed_abs, tag = 'smem constant byte address 0x4 - core index']
  #allocation1 [shape = 'u32[144,128]{1,0:T(1,128)}', space=vmem, size = 0x12000, scoped, tag = 'internal scratch']
  %s0 = inlined_call_operand.vmem [shape: bf16[8,16], index: 0, kind: input, shape index: {}]
  %s1 = inlined_call_operand.hbm [shape: bf16[16,64], index: 1, kind: input, shape index: {}]
  %s2 = inlined_call_operand.vmem [shape: bf16[64,64], index: 2, kind: input, shape index: {}]
  %s3 = inlined_call_operand.vmem [shape: bf16[64,32], index: 3, kind: input, shape index: {}]
  %s4 = inlined_call_operand.vmem [shape: bf16[32,128], index: 4, kind: input, shape index: {}]
  %s5 = inlined_call_operand.hbm [shape: f32[16,128], index: 5, kind: input, shape index: {}]
  %s6 = inlined_call_operand.vmem [shape: bf16[8,128], index: 6, kind: output, shape index: {}]
  %s7 = sld [smem:[#allocation0]]
  $region42: #{dqn_forward.1} parent=0
    _
  %s9 = ssub.s32 1, %s7
  %s10 = scalar_select 0, %s9, %s7
  $region1: #{dqn_forward.1} parent=0
    #allocation2 [shape = 'u8[4096]{0}', space=vmem, size = 0x1000, scoped, tag = 'input window, operand 1, single buffered']
    #allocation3 [shape = 's32[1]{0}', space=sflag, size = 0x4, scoped, tag = 'scoped memory for dqn_forward.1']
    #allocation4 [shape = 'u8[8192]{0}', space=vmem, size = 0x2000, scoped, tag = 'input window, operand 5, single buffered']
    #allocation5 [shape = 's32[1]{0}', space=sflag, size = 0x4, scoped, tag = 'scoped memory for dqn_forward.1']
    %11 = vsyncpa [#allocation3], 0
    %12 = vsyncpa [#allocation5], 0
    // Predicated region
    $region2: #{dqn_forward.1} parent=1 // pred_check
      _
    $region3: #{dqn_forward.1} parent=1 // pred_check_branch
      %14 = sbr.rel (0) target = $region5
    $region4: #{dqn_forward.1} parent=1 // pred_region
      _
    $region5: #{dqn_forward.1} parent=1 // pred_fallthru
      _
    // Predicated region
    $region6: #{dqn_forward.1} parent=1 // pred_check
      _
    $region7: #{dqn_forward.1} parent=1 // pred_check_branch
      %16 = sbr.rel (0) target = $region9
    $region8: #{dqn_forward.1} parent=1 // pred_region
      %s18 = ssub.s32 128, 128
      %19 = vsyncadd [#allocation3], %s18
      %s20 = sshll.u32 [#allocation2], 4
      %s21 = int_to_ptr.vmem [resolvable:$true] %s20
      %26 = dma.hbm_to_vmem [thread:$0]  %s1, 128, %s21, [#allocation3], 64, 64, 4
    $region9: #{dqn_forward.1} parent=1 // pred_fallthru
      _
    // Predicated region
    $region10: #{dqn_forward.1} parent=1 // pred_check
      _
    $region11: #{dqn_forward.1} parent=1 // pred_check_branch
      %28 = sbr.rel (0) target = $region13
    $region12: #{dqn_forward.1} parent=1 // pred_region
      _
    $region13: #{dqn_forward.1} parent=1 // pred_fallthru
      _
    // Predicated region
    $region14: #{dqn_forward.1} parent=1 // pred_check
      _
    $region15: #{dqn_forward.1} parent=1 // pred_check_branch
      %30 = sbr.rel (0) target = $region17
    $region16: #{dqn_forward.1} parent=1 // pred_region
      _
    $region17: #{dqn_forward.1} parent=1 // pred_fallthru
      _
    // Predicated region
    $region18: #{dqn_forward.1} parent=1 // pred_check
      _
    $region19: #{dqn_forward.1} parent=1 // pred_check_branch
      %32 = sbr.rel (0) target = $region21
    $region20: #{dqn_forward.1} parent=1 // pred_region
      _
    $region21: #{dqn_forward.1} parent=1 // pred_fallthru
      _
    // Predicated region
    $region22: #{dqn_forward.1} parent=1 // pred_check
      _
    $region23: #{dqn_forward.1} parent=1 // pred_check_branch
      %34 = sbr.rel (0) target = $region25
    $region24: #{dqn_forward.1} parent=1 // pred_region
      %s36 = ssub.s32 256, 256
      %37 = vsyncadd [#allocation5], %s36
      %s38 = sshll.u32 [#allocation4], 4
      %s39 = int_to_ptr.vmem [resolvable:$true] %s38
      %44 = dma.hbm_to_vmem [thread:$0]  %s5, 256, %s39, [#allocation5], 128, 128, 8
    $region25: #{dqn_forward.1} parent=1 // pred_fallthru
      _
    // Predicated region
    $region26: #{dqn_forward.1} parent=1 // pred_check
      _
    $region27: #{dqn_forward.1} parent=1 // pred_check_branch
      %46 = sbr.rel (0) target = $region29
    $region28: #{dqn_forward.1} parent=1 // pred_region
      %47 = dma.done [#allocation3], 128
    $region29: #{dqn_forward.1} parent=1 // pred_fallthru
      _
    // Predicated region
    $region30: #{dqn_forward.1} parent=1 // pred_check
      _
    $region31: #{dqn_forward.1} parent=1 // pred_check_branch
      %49 = sbr.rel (0) target = $region33
    $region32: #{dqn_forward.1} parent=1 // pred_region
      %50 = dma.done [#allocation5], 256
    $region33: #{dqn_forward.1} parent=1 // pred_fallthru
      _
    %v52 = vld [vmem:[#allocation4] sm:$0xff]
    %v53 = vld [vmem:[#allocation4 + $0x8] sm:$0xff]
    %v54 = vld [vmem:[%s0] sm:$0xf]
    %v55 = vld [vmem:[#allocation2] sm:$0xf]
    %v56 = vld [vmem:[#allocation2 + $0x4] sm:$0xf]
    %v57 = vlaneseq
    %v58 = vshrl.u32 %v57, 7
    %v59 = vsub.s32 0, %v58
    %v60 = vrot.slane %v52, %v59
    %v63 = vunpack.c.l.b16 %v55
    %v64 = vunpack.c.l.b16 %v56
    %v65 = vpack.c.b16 %v64, %v63
    %vm67 = vcmask 130048
    %v69 = vsel %vm67, %v54, 0
    %71 = vmatprep.subr.bf16.mxu0 0
    %72 = vmatpush1.bf16.msra.mxu0 %v65
    %73 = vmatprep.subr.bf16.mxu0 0
    %74 = vmatpush1.bf16.msra.mxu0 0
    %75 = vmatprep.subr.bf16.mxu0 0
    %76 = vmatpush1.bf16.msra.mxu0 0
    %77 = vmatprep.subr.bf16.mxu0 0
    %78 = vmatpush1.bf16.msra.mxu0 0
    %79 = vmatprep.subr.bf16.mxu0 0
    %80 = vmatpush1.bf16.msra.mxu0 0
    %81 = vmatprep.subr.bf16.mxu0 0
    %82 = vmatpush1.bf16.msra.mxu0 0
    %83 = vmatprep.subr.bf16.mxu0 0
    %84 = vmatpush1.bf16.msra.mxu0 0
    %85 = vmatprep.subr.bf16.mxu0 0
    %86 = vmatpush1.bf16.msra.mxu0 0
    %87 = vmatprep.subr.bf16.mxu0 0
    %88 = vmatpush1.bf16.msra.mxu0 0
    %89 = vmatprep.subr.bf16.mxu0 0
    %90 = vmatpush1.bf16.msra.mxu0 0
    %91 = vmatprep.subr.bf16.mxu0 0
    %92 = vmatpush1.bf16.msra.mxu0 0
    %93 = vmatprep.subr.bf16.mxu0 0
    %94 = vmatpush1.bf16.msra.mxu0 0
    %95 = vmatprep.subr.bf16.mxu0 0
    %96 = vmatpush1.bf16.msra.mxu0 0
    %97 = vmatprep.subr.bf16.mxu0 0
    %98 = vmatpush1.bf16.msra.mxu0 0
    %99 = vmatprep.subr.bf16.mxu0 0
    %100 = vmatpush1.bf16.msra.mxu0 0
    %101 = vmatprep.subr.bf16.mxu0 0
    %102 = vmatpush1.bf16.msra.mxu0 0
    %103 = vmatprep.mubr.bf16.mxu0 0
    %104 = vmatmul.mubr.bf16.gmra.mrb[0].mxu0 %v69
    %v105 = vpop.f32.mrb[0].mxu0
    %v106 = vadd.f32 %v60, %v105
    %v107 = vpop.f32.mrb[0].mxu0
    %v108 = vpop.f32.mrb[0].mxu0
    %v109 = vpop.f32.mrb[0].mxu0
    %110 = vdwg.mxu0
    %vm111 = vcmask 523264
    %v113 = vsel %vm111, %v106, 0
    %115 = vmatprep.subr.mxu0 0.0
    %116 = vmatpush1.msra.mxu0 0.015625
    %117 = vmatprep.subr.mxu0 0.0
    %118 = vmatpush1.msra.mxu0 0.015625
    %119 = vmatprep.subr.mxu0 0.0
    %120 = vmatpush1.msra.mxu0 0.015625
    %121 = vmatprep.subr.mxu0 0.0
    %122 = vmatpush1.msra.mxu0 0.015625
    %123 = vmatprep.subr.mxu0 0.0
    %124 = vmatpush1.msra.mxu0 0.015625
    %125 = vmatprep.subr.mxu0 0.0
    %126 = vmatpush1.msra.mxu0 0.015625
    %127 = vmatprep.subr.mxu0 0.0
    %128 = vmatpush1.msra.mxu0 0.015625
    %129 = vmatprep.subr.mxu0 0.0
    %130 = vmatpush1.msra.mxu0 0.015625
    %131 = vmatprep.subr.mxu0 0.0
    %132 = vmatpush1.msra.mxu0 0.0
    %133 = vmatprep.subr.mxu0 0.0
    %134 = vmatpush1.msra.mxu0 0.0
    %135 = vmatprep.subr.mxu0 0.0
    %136 = vmatpush1.msra.mxu0 0.0
    %137 = vmatprep.subr.mxu0 0.0
    %138 = vmatpush1.msra.mxu0 0.0
    %139 = vmatprep.subr.mxu0 0.0
    %140 = vmatpush1.msra.mxu0 0.0
    %141 = vmatprep.subr.mxu0 0.0
    %142 = vmatpush1.msra.mxu0 0.0
    %143 = vmatprep.subr.mxu0 0.0
    %144 = vmatpush1.msra.mxu0 0.0
    %145 = vmatprep.subr.mxu0 0.0
    %146 = vmatpush1.msra.mxu0 0.0
    %147 = vmatprep.subr.mxu0 0.0
    %148 = vmatpush1.msra.mxu0 0.0
    %149 = vmatprep.subr.mxu0 0.0
    %150 = vmatpush1.msra.mxu0 0.0
    %151 = vmatprep.subr.mxu0 0.0
    %152 = vmatpush1.msra.mxu0 0.0
    %153 = vmatprep.subr.mxu0 0.0
    %154 = vmatpush1.msra.mxu0 0.0
    %155 = vmatprep.subr.mxu0 0.0
    %156 = vmatpush1.msra.mxu0 0.0
    %157 = vmatprep.subr.mxu0 0.0
    %158 = vmatpush1.msra.mxu0 0.0
    %159 = vmatprep.subr.mxu0 0.0
    %160 = vmatpush1.msra.mxu0 0.0
    %161 = vmatprep.subr.mxu0 0.0
    %162 = vmatpush1.msra.mxu0 0.0
    %163 = vmatprep.subr.mxu0 0.0
    %164 = vmatpush1.msra.mxu0 0.0
    %165 = vmatprep.subr.mxu0 0.0
    %166 = vmatpush1.msra.mxu0 0.0
    %167 = vmatprep.subr.mxu0 0.0
    %168 = vmatpush1.msra.mxu0 0.0
    %169 = vmatprep.subr.mxu0 0.0
    %170 = vmatpush1.msra.mxu0 0.0
    %171 = vmatprep.subr.mxu0 0.0
    %172 = vmatpush1.msra.mxu0 0.0
    %173 = vmatprep.subr.mxu0 0.0
    %174 = vmatpush1.msra.mxu0 0.0
    %175 = vmatprep.subr.mxu0 0.0
    %176 = vmatpush1.msra.mxu0 0.0
    %177 = vmatprep.subr.mxu0 0.0
    %178 = vmatpush1.msra.mxu0 0.0
    %179 = vmatprep.mubr.f32.mxu0 0.0
    %180 = vmatmul.mubr.f32.gmra.mrb[0].mxu0 %v113
    %v181 = vpop.f32.mrb[0].mxu0
    %v182 = vadd.f32 0.0, %v181
    %v183 = vpop.f32.mrb[0].mxu0
    %184 = vdwg.mxu0
    %v185 = vsub.f32 %v106, %v182
    %v186 = vmul.f32 %v185, %v185
    %v188 = vsel %vm111, %v186, 0
    %190 = vmatprep.subr.mxu0 0.0
    %191 = vmatpush1.msra.mxu0 0.015625
    %192 = vmatprep.subr.mxu0 0.0
    %193 = vmatpush1.msra.mxu0 0.015625
    %194 = vmatprep.subr.mxu0 0.0
    %195 = vmatpush1.msra.mxu0 0.015625
    %196 = vmatprep.subr.mxu0 0.0
    %197 = vmatpush1.msra.mxu0 0.015625
    %198 = vmatprep.subr.mxu0 0.0
    %199 = vmatpush1.msra.mxu0 0.015625
    %200 = vmatprep.subr.mxu0 0.0
    %201 = vmatpush1.msra.mxu0 0.015625
    %202 = vmatprep.subr.mxu0 0.0
    %203 = vmatpush1.msra.mxu0 0.015625
    %204 = vmatprep.subr.mxu0 0.0
    %205 = vmatpush1.msra.mxu0 0.015625
    %206 = vmatprep.subr.mxu0 0.0
    %207 = vmatpush1.msra.mxu0 0.0
    %208 = vmatprep.subr.mxu0 0.0
    %209 = vmatpush1.msra.mxu0 0.0
    %210 = vmatprep.subr.mxu0 0.0
    %211 = vmatpush1.msra.mxu0 0.0
    %212 = vmatprep.subr.mxu0 0.0
    %213 = vmatpush1.msra.mxu0 0.0
    %214 = vmatprep.subr.mxu0 0.0
    %215 = vmatpush1.msra.mxu0 0.0
    %216 = vmatprep.subr.mxu0 0.0
    %217 = vmatpush1.msra.mxu0 0.0
    %218 = vmatprep.subr.mxu0 0.0
    %219 = vmatpush1.msra.mxu0 0.0
    %220 = vmatprep.subr.mxu0 0.0
    %221 = vmatpush1.msra.mxu0 0.0
    %222 = vmatprep.subr.mxu0 0.0
    %223 = vmatpush1.msra.mxu0 0.0
    %224 = vmatprep.subr.mxu0 0.0
    %225 = vmatpush1.msra.mxu0 0.0
    %226 = vmatprep.subr.mxu0 0.0
    %227 = vmatpush1.msra.mxu0 0.0
    %228 = vmatprep.subr.mxu0 0.0
    %229 = vmatpush1.msra.mxu0 0.0
    %230 = vmatprep.subr.mxu0 0.0
    %231 = vmatpush1.msra.mxu0 0.0
    %232 = vmatprep.subr.mxu0 0.0
    %233 = vmatpush1.msra.mxu0 0.0
    %234 = vmatprep.subr.mxu0 0.0
    %235 = vmatpush1.msra.mxu0 0.0
    %236 = vmatprep.subr.mxu0 0.0
    %237 = vmatpush1.msra.mxu0 0.0
    %238 = vmatprep.subr.mxu0 0.0
    %239 = vmatpush1.msra.mxu0 0.0
    %240 = vmatprep.subr.mxu0 0.0
    %241 = vmatpush1.msra.mxu0 0.0
    %242 = vmatprep.subr.mxu0 0.0
    %243 = vmatpush1.msra.mxu0 0.0
    %244 = vmatprep.subr.mxu0 0.0
    %245 = vmatpush1.msra.mxu0 0.0
    %246 = vmatprep.subr.mxu0 0.0
    %247 = vmatpush1.msra.mxu0 0.0
    %248 = vmatprep.subr.mxu0 0.0
    %249 = vmatpush1.msra.mxu0 0.0
    %250 = vmatprep.subr.mxu0 0.0
    %251 = vmatpush1.msra.mxu0 0.0
    %252 = vmatprep.subr.mxu0 0.0
    %253 = vmatpush1.msra.mxu0 0.0
    %254 = vmatprep.mubr.f32.mxu0 0.0
    %255 = vmatmul.mubr.f32.gmra.mrb[0].mxu0 %v188
    %v256 = vpop.f32.mrb[0].mxu0
    %v257 = vadd.f32 1e-05, %v256
    %v258 = vpop.f32.mrb[0].mxu0
    %259 = vdwg.mxu0
    %v260 = vrsqrt.pop %v257
    %v261 = vmul.f32 %v185, %v260
    %v262 = vlaneseq
    %v263 = vshrl.u32 %v262, 7
    %v264 = vsub.s32 1, %v263
    %v265 = vrot.slane %v52, %v264
    %v266 = vmul.f32 %v261, %v265
    %v267 = vlaneseq
    %v268 = vshrl.u32 %v267, 7
    %v269 = vsub.s32 2, %v268
    %v270 = vrot.slane %v52, %v269
    %v271 = vadd.f32 %v266, %v270
    %v272 = vmax.f32 %v271, 0.0
    %v273 = vpack.c.bf16 %v272, %v272
    %v274 = vld [vmem:[%s2] sm:$0xf]
    %v275 = vld [vmem:[%s2 + $0x4] sm:$0xf]
    %v276 = vld [vmem:[%s2 + $0x8] sm:$0xf]
    %v277 = vld [vmem:[%s2 + $0xc] sm:$0xf]
    %v278 = vld [vmem:[%s2 + $0x10] sm:$0xf]
    %v279 = vld [vmem:[%s2 + $0x14] sm:$0xf]
    %v280 = vld [vmem:[%s2 + $0x18] sm:$0xf]
    %v281 = vld [vmem:[%s2 + $0x1c] sm:$0xf]
    %v282 = vlaneseq
    %v283 = vshrl.u32 %v282, 7
    %v284 = vsub.s32 3, %v283
    %v285 = vrot.slane %v52, %v284
    %v294 = vunpack.c.l.b16 %v274
    %v295 = vunpack.c.l.b16 %v275
    %v296 = vunpack.c.l.b16 %v276
    %v297 = vunpack.c.l.b16 %v277
    %v298 = vunpack.c.l.b16 %v278
    %v299 = vunpack.c.l.b16 %v279
    %v300 = vunpack.c.l.b16 %v280
    %v301 = vunpack.c.l.b16 %v281
    %v302 = vpack.c.b16 %v295, %v294
    %v303 = vpack.c.b16 %v297, %v296
    %v304 = vpack.c.b16 %v299, %v298
    %v305 = vpack.c.b16 %v301, %v300
    %v311 = vsel %vm111, %v273, 0
    %313 = vmatprep.subr.bf16.mxu0 0
    %314 = vmatpush1.bf16.msra.mxu0 %v302
    %315 = vmatprep.subr.bf16.mxu0 0
    %316 = vmatpush1.bf16.msra.mxu0 %v303
    %317 = vmatprep.subr.bf16.mxu0 0
    %318 = vmatpush1.bf16.msra.mxu0 %v304
    %319 = vmatprep.subr.bf16.mxu0 0
    %320 = vmatpush1.bf16.msra.mxu0 %v305
    %321 = vmatprep.subr.bf16.mxu0 0
    %322 = vmatpush1.bf16.msra.mxu0 0
    %323 = vmatprep.subr.bf16.mxu0 0
    %324 = vmatpush1.bf16.msra.mxu0 0
    %325 = vmatprep.subr.bf16.mxu0 0
    %326 = vmatpush1.bf16.msra.mxu0 0
    %327 = vmatprep.subr.bf16.mxu0 0
    %328 = vmatpush1.bf16.msra.mxu0 0
    %329 = vmatprep.subr.bf16.mxu0 0
    %330 = vmatpush1.bf16.msra.mxu0 0
    %331 = vmatprep.subr.bf16.mxu0 0
    %332 = vmatpush1.bf16.msra.mxu0 0
    %333 = vmatprep.subr.bf16.mxu0 0
    %334 = vmatpush1.bf16.msra.mxu0 0
    %335 = vmatprep.subr.bf16.mxu0 0
    %336 = vmatpush1.bf16.msra.mxu0 0
    %337 = vmatprep.subr.bf16.mxu0 0
    %338 = vmatpush1.bf16.msra.mxu0 0
    %339 = vmatprep.subr.bf16.mxu0 0
    %340 = vmatpush1.bf16.msra.mxu0 0
    %341 = vmatprep.subr.bf16.mxu0 0
    %342 = vmatpush1.bf16.msra.mxu0 0
    %343 = vmatprep.subr.bf16.mxu0 0
    %344 = vmatpush1.bf16.msra.mxu0 0
    %345 = vmatprep.mubr.bf16.mxu0 0
    %346 = vmatmul.mubr.bf16.gmra.mrb[0].mxu0 %v311
    %v347 = vpop.f32.mrb[0].mxu0
    %v348 = vadd.f32 %v285, %v347
    %v349 = vpop.f32.mrb[0].mxu0
    %v350 = vpop.f32.mrb[0].mxu0
    %v351 = vpop.f32.mrb[0].mxu0
    %352 = vdwg.mxu0
    %v354 = vsel %vm111, %v348, 0
    %356 = vmatprep.subr.mxu0 0.0
    %357 = vmatpush1.msra.mxu0 0.015625
    %358 = vmatprep.subr.mxu0 0.0
    %359 = vmatpush1.msra.mxu0 0.015625
    %360 = vmatprep.subr.mxu0 0.0
    %361 = vmatpush1.msra.mxu0 0.015625
    %362 = vmatprep.subr.mxu0 0.0
    %363 = vmatpush1.msra.mxu0 0.015625
    %364 = vmatprep.subr.mxu0 0.0
    %365 = vmatpush1.msra.mxu0 0.015625
    %366 = vmatprep.subr.mxu0 0.0
    %367 = vmatpush1.msra.mxu0 0.015625
    %368 = vmatprep.subr.mxu0 0.0
    %369 = vmatpush1.msra.mxu0 0.015625
    %370 = vmatprep.subr.mxu0 0.0
    %371 = vmatpush1.msra.mxu0 0.015625
    %372 = vmatprep.subr.mxu0 0.0
    %373 = vmatpush1.msra.mxu0 0.0
    %374 = vmatprep.subr.mxu0 0.0
    %375 = vmatpush1.msra.mxu0 0.0
    %376 = vmatprep.subr.mxu0 0.0
    %377 = vmatpush1.msra.mxu0 0.0
    %378 = vmatprep.subr.mxu0 0.0
    %379 = vmatpush1.msra.mxu0 0.0
    %380 = vmatprep.subr.mxu0 0.0
    %381 = vmatpush1.msra.mxu0 0.0
    %382 = vmatprep.subr.mxu0 0.0
    %383 = vmatpush1.msra.mxu0 0.0
    %384 = vmatprep.subr.mxu0 0.0
    %385 = vmatpush1.msra.mxu0 0.0
    %386 = vmatprep.subr.mxu0 0.0
    %387 = vmatpush1.msra.mxu0 0.0
    %388 = vmatprep.subr.mxu0 0.0
    %389 = vmatpush1.msra.mxu0 0.0
    %390 = vmatprep.subr.mxu0 0.0
    %391 = vmatpush1.msra.mxu0 0.0
    %392 = vmatprep.subr.mxu0 0.0
    %393 = vmatpush1.msra.mxu0 0.0
    %394 = vmatprep.subr.mxu0 0.0
    %395 = vmatpush1.msra.mxu0 0.0
    %396 = vmatprep.subr.mxu0 0.0
    %397 = vmatpush1.msra.mxu0 0.0
    %398 = vmatprep.subr.mxu0 0.0
    %399 = vmatpush1.msra.mxu0 0.0
    %400 = vmatprep.subr.mxu0 0.0
    %401 = vmatpush1.msra.mxu0 0.0
    %402 = vmatprep.subr.mxu0 0.0
    %403 = vmatpush1.msra.mxu0 0.0
    %404 = vmatprep.subr.mxu0 0.0
    %405 = vmatpush1.msra.mxu0 0.0
    %406 = vmatprep.subr.mxu0 0.0
    %407 = vmatpush1.msra.mxu0 0.0
    %408 = vmatprep.subr.mxu0 0.0
    %409 = vmatpush1.msra.mxu0 0.0
    %410 = vmatprep.subr.mxu0 0.0
    %411 = vmatpush1.msra.mxu0 0.0
    %412 = vmatprep.subr.mxu0 0.0
    %413 = vmatpush1.msra.mxu0 0.0
    %414 = vmatprep.subr.mxu0 0.0
    %415 = vmatpush1.msra.mxu0 0.0
    %416 = vmatprep.subr.mxu0 0.0
    %417 = vmatpush1.msra.mxu0 0.0
    %418 = vmatprep.subr.mxu0 0.0
    %419 = vmatpush1.msra.mxu0 0.0
    %420 = vmatprep.mubr.f32.mxu0 0.0
    %421 = vmatmul.mubr.f32.gmra.mrb[0].mxu0 %v354
    %v422 = vpop.f32.mrb[0].mxu0
    %v423 = vadd.f32 0.0, %v422
    %v424 = vpop.f32.mrb[0].mxu0
    %425 = vdwg.mxu0
    %v426 = vsub.f32 %v348, %v423
    %v427 = vmul.f32 %v426, %v426
    %v429 = vsel %vm111, %v427, 0
    %431 = vmatprep.subr.mxu0 0.0
    %432 = vmatpush1.msra.mxu0 0.015625
    %433 = vmatprep.subr.mxu0 0.0
    %434 = vmatpush1.msra.mxu0 0.015625
    %435 = vmatprep.subr.mxu0 0.0
    %436 = vmatpush1.msra.mxu0 0.015625
    %437 = vmatprep.subr.mxu0 0.0
    %438 = vmatpush1.msra.mxu0 0.015625
    %439 = vmatprep.subr.mxu0 0.0
    %440 = vmatpush1.msra.mxu0 0.015625
    %441 = vmatprep.subr.mxu0 0.0
    %442 = vmatpush1.msra.mxu0 0.015625
    %443 = vmatprep.subr.mxu0 0.0
    %444 = vmatpush1.msra.mxu0 0.015625
    %445 = vmatprep.subr.mxu0 0.0
    %446 = vmatpush1.msra.mxu0 0.015625
    %447 = vmatprep.subr.mxu0 0.0
    %448 = vmatpush1.msra.mxu0 0.0
    %449 = vmatprep.subr.mxu0 0.0
    %450 = vmatpush1.msra.mxu0 0.0
    %451 = vmatprep.subr.mxu0 0.0
    %452 = vmatpush1.msra.mxu0 0.0
    %453 = vmatprep.subr.mxu0 0.0
    %454 = vmatpush1.msra.mxu0 0.0
    %455 = vmatprep.subr.mxu0 0.0
    %456 = vmatpush1.msra.mxu0 0.0
    %457 = vmatprep.subr.mxu0 0.0
    %458 = vmatpush1.msra.mxu0 0.0
    %459 = vmatprep.subr.mxu0 0.0
    %460 = vmatpush1.msra.mxu0 0.0
    %461 = vmatprep.subr.mxu0 0.0
    %462 = vmatpush1.msra.mxu0 0.0
    %463 = vmatprep.subr.mxu0 0.0
    %464 = vmatpush1.msra.mxu0 0.0
    %465 = vmatprep.subr.mxu0 0.0
    %466 = vmatpush1.msra.mxu0 0.0
    %467 = vmatprep.subr.mxu0 0.0
    %468 = vmatpush1.msra.mxu0 0.0
    %469 = vmatprep.subr.mxu0 0.0
    %470 = vmatpush1.msra.mxu0 0.0
    %471 = vmatprep.subr.mxu0 0.0
    %472 = vmatpush1.msra.mxu0 0.0
    %473 = vmatprep.subr.mxu0 0.0
    %474 = vmatpush1.msra.mxu0 0.0
    %475 = vmatprep.subr.mxu0 0.0
    %476 = vmatpush1.msra.mxu0 0.0
    %477 = vmatprep.subr.mxu0 0.0
    %478 = vmatpush1.msra.mxu0 0.0
    %479 = vmatprep.subr.mxu0 0.0
    %480 = vmatpush1.msra.mxu0 0.0
    %481 = vmatprep.subr.mxu0 0.0
    %482 = vmatpush1.msra.mxu0 0.0
    %483 = vmatprep.subr.mxu0 0.0
    %484 = vmatpush1.msra.mxu0 0.0
    %485 = vmatprep.subr.mxu0 0.0
    %486 = vmatpush1.msra.mxu0 0.0
    %487 = vmatprep.subr.mxu0 0.0
    %488 = vmatpush1.msra.mxu0 0.0
    %489 = vmatprep.subr.mxu0 0.0
    %490 = vmatpush1.msra.mxu0 0.0
    %491 = vmatprep.subr.mxu0 0.0
    %492 = vmatpush1.msra.mxu0 0.0
    %493 = vmatprep.subr.mxu0 0.0
    %494 = vmatpush1.msra.mxu0 0.0
    %495 = vmatprep.mubr.f32.mxu0 0.0
    %496 = vmatmul.mubr.f32.gmra.mrb[0].mxu0 %v429
    %v497 = vpop.f32.mrb[0].mxu0
    %v498 = vadd.f32 1e-05, %v497
    %v499 = vpop.f32.mrb[0].mxu0
    %500 = vdwg.mxu0
    %v501 = vrsqrt.pop %v498
    %v502 = vmul.f32 %v426, %v501
    %v503 = vlaneseq
    %v504 = vshrl.u32 %v503, 7
    %v505 = vsub.s32 4, %v504
    %v506 = vrot.slane %v52, %v505
    %v507 = vmul.f32 %v502, %v506
    %v508 = vlaneseq
    %v509 = vshrl.u32 %v508, 7
    %v510 = vsub.s32 5, %v509
    %v511 = vrot.slane %v52, %v510
    %v512 = vadd.f32 %v507, %v511
    %v513 = vmax.f32 %v512, 0.0
    %v514 = vpack.c.bf16 %v513, %v513
    %v515 = vld [vmem:[%s3] sm:$0xf]
    %v516 = vld [vmem:[%s3 + $0x4] sm:$0xf]
    %v517 = vld [vmem:[%s3 + $0x8] sm:$0xf]
    %v518 = vld [vmem:[%s3 + $0xc] sm:$0xf]
    %v519 = vld [vmem:[%s3 + $0x10] sm:$0xf]
    %v520 = vld [vmem:[%s3 + $0x14] sm:$0xf]
    %v521 = vld [vmem:[%s3 + $0x18] sm:$0xf]
    %v522 = vld [vmem:[%s3 + $0x1c] sm:$0xf]
    %v523 = vlaneseq
    %v524 = vshrl.u32 %v523, 7
    %v525 = vsub.s32 6, %v524
    %v526 = vrot.slane %v52, %v525
    %v535 = vunpack.c.l.b16 %v515
    %v536 = vunpack.c.l.b16 %v516
    %v537 = vunpack.c.l.b16 %v517
    %v538 = vunpack.c.l.b16 %v518
    %v539 = vunpack.c.l.b16 %v519
    %v540 = vunpack.c.l.b16 %v520
    %v541 = vunpack.c.l.b16 %v521
    %v542 = vunpack.c.l.b16 %v522
    %v543 = vpack.c.b16 %v536, %v535
    %v544 = vpack.c.b16 %v538, %v537
    %v545 = vpack.c.b16 %v540, %v539
    %v546 = vpack.c.b16 %v542, %v541
    %v552 = vsel %vm111, %v514, 0
    %554 = vmatprep.subr.bf16.mxu0 0
    %555 = vmatpush1.bf16.msra.mxu0 %v543
    %556 = vmatprep.subr.bf16.mxu0 0
    %557 = vmatpush1.bf16.msra.mxu0 %v544
    %558 = vmatprep.subr.bf16.mxu0 0
    %559 = vmatpush1.bf16.msra.mxu0 %v545
    %560 = vmatprep.subr.bf16.mxu0 0
    %561 = vmatpush1.bf16.msra.mxu0 %v546
    %562 = vmatprep.subr.bf16.mxu0 0
    %563 = vmatpush1.bf16.msra.mxu0 0
    %564 = vmatprep.subr.bf16.mxu0 0
    %565 = vmatpush1.bf16.msra.mxu0 0
    %566 = vmatprep.subr.bf16.mxu0 0
    %567 = vmatpush1.bf16.msra.mxu0 0
    %568 = vmatprep.subr.bf16.mxu0 0
    %569 = vmatpush1.bf16.msra.mxu0 0
    %570 = vmatprep.subr.bf16.mxu0 0
    %571 = vmatpush1.bf16.msra.mxu0 0
    %572 = vmatprep.subr.bf16.mxu0 0
    %573 = vmatpush1.bf16.msra.mxu0 0
    %574 = vmatprep.subr.bf16.mxu0 0
    %575 = vmatpush1.bf16.msra.mxu0 0
    %576 = vmatprep.subr.bf16.mxu0 0
    %577 = vmatpush1.bf16.msra.mxu0 0
    %578 = vmatprep.subr.bf16.mxu0 0
    %579 = vmatpush1.bf16.msra.mxu0 0
    %580 = vmatprep.subr.bf16.mxu0 0
    %581 = vmatpush1.bf16.msra.mxu0 0
    %582 = vmatprep.subr.bf16.mxu0 0
    %583 = vmatpush1.bf16.msra.mxu0 0
    %584 = vmatprep.subr.bf16.mxu0 0
    %585 = vmatpush1.bf16.msra.mxu0 0
    %586 = vmatprep.mubr.bf16.mxu0 0
    %587 = vmatmul.mubr.bf16.gmra.mrb[0].mxu0 %v552
    %v588 = vpop.f32.mrb[0].mxu0
    %v589 = vadd.f32 %v526, %v588
    %v590 = vpop.f32.mrb[0].mxu0
    %v591 = vpop.f32.mrb[0].mxu0
    %v592 = vpop.f32.mrb[0].mxu0
    %593 = vdwg.mxu0
    %vm594 = vcmask 261120
    %v596 = vsel %vm594, %v589, 0
    %598 = vmatprep.subr.mxu0 0.0
    %599 = vmatpush1.msra.mxu0 0.03125
    %600 = vmatprep.subr.mxu0 0.0
    %601 = vmatpush1.msra.mxu0 0.03125
    %602 = vmatprep.subr.mxu0 0.0
    %603 = vmatpush1.msra.mxu0 0.03125
    %604 = vmatprep.subr.mxu0 0.0
    %605 = vmatpush1.msra.mxu0 0.03125
    %606 = vmatprep.subr.mxu0 0.0
    %607 = vmatpush1.msra.mxu0 0.0
    %608 = vmatprep.subr.mxu0 0.0
    %609 = vmatpush1.msra.mxu0 0.0
    %610 = vmatprep.subr.mxu0 0.0
    %611 = vmatpush1.msra.mxu0 0.0
    %612 = vmatprep.subr.mxu0 0.0
    %613 = vmatpush1.msra.mxu0 0.0
    %614 = vmatprep.subr.mxu0 0.0
    %615 = vmatpush1.msra.mxu0 0.0
    %616 = vmatprep.subr.mxu0 0.0
    %617 = vmatpush1.msra.mxu0 0.0
    %618 = vmatprep.subr.mxu0 0.0
    %619 = vmatpush1.msra.mxu0 0.0
    %620 = vmatprep.subr.mxu0 0.0
    %621 = vmatpush1.msra.mxu0 0.0
    %622 = vmatprep.subr.mxu0 0.0
    %623 = vmatpush1.msra.mxu0 0.0
    %624 = vmatprep.subr.mxu0 0.0
    %625 = vmatpush1.msra.mxu0 0.0
    %626 = vmatprep.subr.mxu0 0.0
    %627 = vmatpush1.msra.mxu0 0.0
    %628 = vmatprep.subr.mxu0 0.0
    %629 = vmatpush1.msra.mxu0 0.0
    %630 = vmatprep.subr.mxu0 0.0
    %631 = vmatpush1.msra.mxu0 0.0
    %632 = vmatprep.subr.mxu0 0.0
    %633 = vmatpush1.msra.mxu0 0.0
    %634 = vmatprep.subr.mxu0 0.0
    %635 = vmatpush1.msra.mxu0 0.0
    %636 = vmatprep.subr.mxu0 0.0
    %637 = vmatpush1.msra.mxu0 0.0
    %638 = vmatprep.subr.mxu0 0.0
    %639 = vmatpush1.msra.mxu0 0.0
    %640 = vmatprep.subr.mxu0 0.0
    %641 = vmatpush1.msra.mxu0 0.0
    %642 = vmatprep.subr.mxu0 0.0
    %643 = vmatpush1.msra.mxu0 0.0
    %644 = vmatprep.subr.mxu0 0.0
    %645 = vmatpush1.msra.mxu0 0.0
    %646 = vmatprep.subr.mxu0 0.0
    %647 = vmatpush1.msra.mxu0 0.0
    %648 = vmatprep.subr.mxu0 0.0
    %649 = vmatpush1.msra.mxu0 0.0
    %650 = vmatprep.subr.mxu0 0.0
    %651 = vmatpush1.msra.mxu0 0.0
    %652 = vmatprep.subr.mxu0 0.0
    %653 = vmatpush1.msra.mxu0 0.0
    %654 = vmatprep.subr.mxu0 0.0
    %655 = vmatpush1.msra.mxu0 0.0
    %656 = vmatprep.subr.mxu0 0.0
    %657 = vmatpush1.msra.mxu0 0.0
    %658 = vmatprep.subr.mxu0 0.0
    %659 = vmatpush1.msra.mxu0 0.0
    %660 = vmatprep.subr.mxu0 0.0
    %661 = vmatpush1.msra.mxu0 0.0
    %662 = vmatprep.mubr.f32.mxu0 0.0
    %663 = vmatmul.mubr.f32.gmra.mrb[0].mxu0 %v596
    %v664 = vpop.f32.mrb[0].mxu0
    %v665 = vadd.f32 0.0, %v664
    %v666 = vpop.f32.mrb[0].mxu0
    %667 = vdwg.mxu0
    %v668 = vsub.f32 %v589, %v665
    %v669 = vmul.f32 %v668, %v668
    %v671 = vsel %vm594, %v669, 0
    %673 = vmatprep.subr.mxu0 0.0
    %674 = vmatpush1.msra.mxu0 0.03125
    %675 = vmatprep.subr.mxu0 0.0
    %676 = vmatpush1.msra.mxu0 0.03125
    %677 = vmatprep.subr.mxu0 0.0
    %678 = vmatpush1.msra.mxu0 0.03125
    %679 = vmatprep.subr.mxu0 0.0
    %680 = vmatpush1.msra.mxu0 0.03125
    %681 = vmatprep.subr.mxu0 0.0
    %682 = vmatpush1.msra.mxu0 0.0
    %683 = vmatprep.subr.mxu0 0.0
    %684 = vmatpush1.msra.mxu0 0.0
    %685 = vmatprep.subr.mxu0 0.0
    %686 = vmatpush1.msra.mxu0 0.0
    %687 = vmatprep.subr.mxu0 0.0
    %688 = vmatpush1.msra.mxu0 0.0
    %689 = vmatprep.subr.mxu0 0.0
    %690 = vmatpush1.msra.mxu0 0.0
    %691 = vmatprep.subr.mxu0 0.0
    %692 = vmatpush1.msra.mxu0 0.0
    %693 = vmatprep.subr.mxu0 0.0
    %694 = vmatpush1.msra.mxu0 0.0
    %695 = vmatprep.subr.mxu0 0.0
    %696 = vmatpush1.msra.mxu0 0.0
    %697 = vmatprep.subr.mxu0 0.0
    %698 = vmatpush1.msra.mxu0 0.0
    %699 = vmatprep.subr.mxu0 0.0
    %700 = vmatpush1.msra.mxu0 0.0
    %701 = vmatprep.subr.mxu0 0.0
    %702 = vmatpush1.msra.mxu0 0.0
    %703 = vmatprep.subr.mxu0 0.0
    %704 = vmatpush1.msra.mxu0 0.0
    %705 = vmatprep.subr.mxu0 0.0
    %706 = vmatpush1.msra.mxu0 0.0
    %707 = vmatprep.subr.mxu0 0.0
    %708 = vmatpush1.msra.mxu0 0.0
    %709 = vmatprep.subr.mxu0 0.0
    %710 = vmatpush1.msra.mxu0 0.0
    %711 = vmatprep.subr.mxu0 0.0
    %712 = vmatpush1.msra.mxu0 0.0
    %713 = vmatprep.subr.mxu0 0.0
    %714 = vmatpush1.msra.mxu0 0.0
    %715 = vmatprep.subr.mxu0 0.0
    %716 = vmatpush1.msra.mxu0 0.0
    %717 = vmatprep.subr.mxu0 0.0
    %718 = vmatpush1.msra.mxu0 0.0
    %719 = vmatprep.subr.mxu0 0.0
    %720 = vmatpush1.msra.mxu0 0.0
    %721 = vmatprep.subr.mxu0 0.0
    %722 = vmatpush1.msra.mxu0 0.0
    %723 = vmatprep.subr.mxu0 0.0
    %724 = vmatpush1.msra.mxu0 0.0
    %725 = vmatprep.subr.mxu0 0.0
    %726 = vmatpush1.msra.mxu0 0.0
    %727 = vmatprep.subr.mxu0 0.0
    %728 = vmatpush1.msra.mxu0 0.0
    %729 = vmatprep.subr.mxu0 0.0
    %730 = vmatpush1.msra.mxu0 0.0
    %731 = vmatprep.subr.mxu0 0.0
    %732 = vmatpush1.msra.mxu0 0.0
    %733 = vmatprep.subr.mxu0 0.0
    %734 = vmatpush1.msra.mxu0 0.0
    %735 = vmatprep.subr.mxu0 0.0
    %736 = vmatpush1.msra.mxu0 0.0
    %737 = vmatprep.mubr.f32.mxu0 0.0
    %738 = vmatmul.mubr.f32.gmra.mrb[0].mxu0 %v671
    %v739 = vpop.f32.mrb[0].mxu0
    %v740 = vadd.f32 1e-05, %v739
    %v741 = vpop.f32.mrb[0].mxu0
    %742 = vdwg.mxu0
    %v743 = vrsqrt.pop %v740
    %v744 = vmul.f32 %v668, %v743
    %v745 = vlaneseq
    %v746 = vshrl.u32 %v745, 7
    %v747 = vsub.s32 7, %v746
    %v748 = vrot.slane %v52, %v747
    %v749 = vmul.f32 %v744, %v748
    %v750 = vlaneseq
    %v751 = vshrl.u32 %v750, 7
    %v752 = vsub.s32 0, %v751
    %v753 = vrot.slane %v53, %v752
    %v754 = vadd.f32 %v749, %v753
    %v755 = vmax.f32 %v754, 0.0
    %v756 = vpack.c.bf16 %v755, %v755
    %v757 = vld [vmem:[%s4] sm:$0xf]
    %v758 = vld [vmem:[%s4 + $0x4] sm:$0xf]
    %v759 = vld [vmem:[%s4 + $0x8] sm:$0xf]
    %v760 = vld [vmem:[%s4 + $0xc] sm:$0xf]
    %v761 = vlaneseq
    %v762 = vshrl.u32 %v761, 7
    %v763 = vsub.s32 1, %v762
    %v764 = vrot.slane %v53, %v763
    %v769 = vunpack.c.l.b16 %v757
    %v770 = vunpack.c.l.b16 %v758
    %v771 = vunpack.c.l.b16 %v759
    %v772 = vunpack.c.l.b16 %v760
    %v773 = vpack.c.b16 %v770, %v769
    %v774 = vpack.c.b16 %v772, %v771
    %v778 = vsel %vm594, %v756, 0
    %780 = vmatprep.subr.bf16.mxu0 0
    %781 = vmatpush1.bf16.msra.mxu0 %v773
    %782 = vmatprep.subr.bf16.mxu0 0
    %783 = vmatpush1.bf16.msra.mxu0 %v774
    %784 = vmatprep.subr.bf16.mxu0 0
    %785 = vmatpush1.bf16.msra.mxu0 0
    %786 = vmatprep.subr.bf16.mxu0 0
    %787 = vmatpush1.bf16.msra.mxu0 0
    %788 = vmatprep.subr.bf16.mxu0 0
    %789 = vmatpush1.bf16.msra.mxu0 0
    %790 = vmatprep.subr.bf16.mxu0 0
    %791 = vmatpush1.bf16.msra.mxu0 0
    %792 = vmatprep.subr.bf16.mxu0 0
    %793 = vmatpush1.bf16.msra.mxu0 0
    %794 = vmatprep.subr.bf16.mxu0 0
    %795 = vmatpush1.bf16.msra.mxu0 0
    %796 = vmatprep.subr.bf16.mxu0 0
    %797 = vmatpush1.bf16.msra.mxu0 0
    %798 = vmatprep.subr.bf16.mxu0 0
    %799 = vmatpush1.bf16.msra.mxu0 0
    %800 = vmatprep.subr.bf16.mxu0 0
    %801 = vmatpush1.bf16.msra.mxu0 0
    %802 = vmatprep.subr.bf16.mxu0 0
    %803 = vmatpush1.bf16.msra.mxu0 0
    %804 = vmatprep.subr.bf16.mxu0 0
    %805 = vmatpush1.bf16.msra.mxu0 0
    %806 = vmatprep.subr.bf16.mxu0 0
    %807 = vmatpush1.bf16.msra.mxu0 0
    %808 = vmatprep.subr.bf16.mxu0 0
    %809 = vmatpush1.bf16.msra.mxu0 0
    %810 = vmatprep.subr.bf16.mxu0 0
    %811 = vmatpush1.bf16.msra.mxu0 0
    %812 = vmatprep.mubr.bf16.mxu0 0
    %813 = vmatmul.mubr.bf16.gmra.mrb[0].mxu0 %v778
    %v814 = vpop.f32.mrb[0].mxu0
    %v815 = vadd.f32 %v764, %v814
    %v816 = vpop.f32.mrb[0].mxu0
    %v817 = vpop.f32.mrb[0].mxu0
    %v818 = vpop.f32.mrb[0].mxu0
    %819 = vdwg.mxu0
    %v820 = vpack.c.bf16 %v815, %v815
    %821 = vst [vmem:[%s6] sm:$0xf] %v820
    // Predicated region
    $region34: #{dqn_forward.1} parent=1 // pred_check
      _
    $region35: #{dqn_forward.1} parent=1 // pred_check_branch
      %823 = sbr.rel (0) target = $region37
    $region36: #{dqn_forward.1} parent=1 // pred_region
      _
    $region37: #{dqn_forward.1} parent=1 // pred_fallthru
      _
    // Predicated region
    $region38: #{dqn_forward.1} parent=1 // pred_check
      _
    $region39: #{dqn_forward.1} parent=1 // pred_check_branch
      %825 = sbr.rel (0) target = $region41
    $region40: #{dqn_forward.1} parent=1 // pred_region
      _
    $region41: #{dqn_forward.1} parent=1 // pred_fallthru
      _
    %826 = vsyncpa [#allocation3], 1
    %827 = vsyncpa [#allocation5], 1

</llo_original>
